<compile_context>
chip_gen: v5e
topology: v5e:2x2
jax: 0.10.0
libtpu: 0.0.40
codegen_flags: <defaults>
</compile_context>

<pallas_src>
import functools

import jax
import jax.numpy as jnp
from jax import lax
from jax.experimental import pallas as pl
from jax.experimental.pallas import tpu as pltpu

_MIB = 1024 * 1024


def _vmem_budget():
    """Return (per-input-buffer tile budget, vmem_limit_bytes), generation-aware."""
    try:
        cap = pltpu.get_tpu_info().vmem_capacity_bytes
    except Exception:  # older jax / query unavailable -> conservative (v7x-safe)
        cap = 64 * _MIB
    if cap <= 64 * _MIB:            # v7x: 64 MiB physical per TensorCore
        return 12 * _MIB, 40 * _MIB
    return 16 * _MIB, 64 * _MIB     # v5e / v6e: 128 MiB physical


def _choose_block_s(S, H, itemsize, budget):
    """Largest sequence tile (multiple of 8) fitting the per-buffer budget.

    Prefers a clean divisor of S (no ragged tile to mask) but only if it does
    not shrink the tile by more than 2x; otherwise returns the largest
    multiple-of-8 tile and the caller masks the ragged last tile in-kernel.
    """
    max_rows = max(8, budget // max(1, H * itemsize))
    if S <= max_rows:
        return S
    t = max(8, (max_rows // 8) * 8)
    tt = t
    while tt >= 8 and tt * 2 >= t:
        if S % tt == 0:
            return tt
        tt -= 8
    return t


# --------------------------------------------------------------------------
# General path: online softmax over a tiled sequence axis.
# --------------------------------------------------------------------------
def _attention_seq_kernel(hs_ref, w_ref, out_ref, m_sc, l_sc, acc_sc,
                          *, block_s, seq_len, ragged):
    # hs_ref : (tS, H)  current sequence tile (batch dim squeezed away)
    # w_ref  : (1, H)   lane-dense attention projection weight
    # out_ref: (1, H)   pooled output for the current batch element
    # m_sc/l_sc : (1,1) f32 running max / running softmax denominator
    # acc_sc    : (1,H) f32 running (un-normalized) pooled accumulator
    k = pl.program_id(1)

    @pl.when(k == 0)
    def _init():
        m_sc[...] = jnp.full_like(m_sc, -jnp.inf)
        l_sc[...] = jnp.zeros_like(l_sc)
        acc_sc[...] = jnp.zeros_like(acc_sc)

    hs = hs_ref[...]                                   # (tS, H), native dtype
    w_row = w_ref[...].astype(hs.dtype)                # (1, H)

    if ragged:
        # Mask rows beyond the true sequence length (last tile only differs,
        # but masking every tile is branch-free and well below the BW bound).
        valid = seq_len - k * block_s
        row_ids = lax.broadcasted_iota(jnp.int32, (block_s, 1), 0)
        row_ok = row_ids < valid                       # (tS, 1)
        hs = jnp.where(row_ok, hs, jnp.zeros_like(hs))

    # scores = hs @ w^T -> (tS, 1); MXU matvec, f32 accumulation.
    scores = lax.dot_general(
        hs, w_row,
        dimension_numbers=(((1,), (1,)), ((), ())),
        preferred_element_type=jnp.float32)

    if ragged:
        scores = jnp.where(row_ok, scores, -jnp.inf)

    # Online softmax over the sequence axis.
    m_prev = m_sc[...]                                           # (1, 1)
    m_new = jnp.maximum(m_prev, jnp.max(scores, axis=0, keepdims=True))
    alpha = jnp.exp(m_prev - m_new)                              # rescale factor
    e = jnp.exp(scores - m_new)                                  # (tS, 1) f32

    l_sc[...] = alpha * l_sc[...] + jnp.sum(e, axis=0, keepdims=True)

    # Weighted pooling on the MXU: (tS,1)^T x (tS,H) -> (1,H).
    part = lax.dot_general(
        e.astype(hs.dtype), hs,
        dimension_numbers=(((0,), (0,)), ((), ())),
        preferred_element_type=jnp.float32)
    acc_sc[...] = alpha * acc_sc[...] + part
    m_sc[...] = m_new

    @pl.when(k == pl.num_programs(1) - 1)
    def _finalize():
        inv_l = pl.reciprocal(l_sc[...], approx=False)
        out_ref[...] = (acc_sc[...] * inv_l).astype(out_ref.dtype)


# --------------------------------------------------------------------------
# Small path: whole sequence in one tile, several batch elements per step.
# --------------------------------------------------------------------------
def _attention_small_kernel(hs_ref, w_ref, out_ref):
    # hs_ref : (Bb, S, H); w_ref : (1, H); out_ref : (Bb, H)
    hs = hs_ref[...]
    w_row = w_ref[...].astype(jnp.float32)                         # (1, H)
    # scores: (Bb, S, 1) in f32 (VPU mul + lane reduce; tiles are tiny here).
    scores = jnp.sum(hs.astype(jnp.float32) * w_row, axis=-1, keepdims=True)
    m = jnp.max(scores, axis=1, keepdims=True)                     # (Bb, 1, 1)
    e = jnp.exp(scores - m)                                        # (Bb, S, 1)
    denom = jnp.sum(e, axis=1, keepdims=True)                      # (Bb, 1, 1)
    wgt = e / denom                                                # f32 weights
    out = jnp.sum(hs * wgt, axis=1)                                # f32 (Bb, H)
    out_ref[...] = out.astype(out_ref.dtype)


# --------------------------------------------------------------------------
# Wrapper
# --------------------------------------------------------------------------
def attention_forward(hidden_states, w, b=None, tile_budget_bytes=None):
    """hidden_states: (B, S, H); w: (H, 1) or (H,); b is ignored.

    The Linear bias is a softmax shift and has no effect on the output, so it
    is dropped from the kernel (no SMEM operand, no broadcast add).
    """
    del b
    B, S, H = hidden_states.shape
    dtype = hidden_states.dtype
    itemsize = dtype.itemsize

    w_row = jnp.asarray(w).reshape(1, H)               # lane-dense (1, H)

    tile_budget, vmem_limit = _vmem_budget()
    if tile_budget_bytes is not None:
        tile_budget = int(tile_budget_bytes)

    cost = pl.CostEstimate(
        flops=4 * B * S * H,                           # scores matvec + pooling
        transcendentals=B * S,                         # exp over scores
        bytes_accessed=B * S * H * itemsize + B * H * itemsize + H * itemsize,
    )

    per_batch_bytes = S * H * itemsize
    # Small-path tile kept at ~4 MiB per buffer: leaves headroom for the f32
    # elementwise intermediates this path materializes, on every generation.
    small_budget = max(1, min(tile_budget, 8 * _MIB) // 2)

    if per_batch_bytes <= small_budget:
        # Small-S regime: whole sequence in one tile -> single-pass softmax;
        # pack multiple batch elements per grid step to amortize the ~0.35 us
        # fixed per-step overhead.
        bb = max(1, min(B, small_budget // max(1, per_batch_bytes)))
        grid = (pl.cdiv(B, bb),)
        return pl.pallas_call(
            _attention_small_kernel,
            out_shape=jax.ShapeDtypeStruct((B, H), dtype),
            grid_spec=pltpu.PrefetchScalarGridSpec(
                num_scalar_prefetch=0,
                grid=grid,
                in_specs=[
                    pl.BlockSpec((bb, S, H), lambda i: (i, 0, 0)),
                    pl.BlockSpec((1, H), lambda i: (0, 0)),
                ],
                out_specs=pl.BlockSpec((bb, H), lambda i: (i, 0)),
            ),
            compiler_params=pltpu.CompilerParams(
                dimension_semantics=("parallel",),
                vmem_limit_bytes=vmem_limit),
            cost_estimate=cost,
        )(hidden_states, w_row)

    # General regime: online softmax over a tiled sequence axis.
    block_s = _choose_block_s(S, H, itemsize, tile_budget)
    num_s_tiles = pl.cdiv(S, block_s)
    ragged = (S % block_s) != 0

    kernel = functools.partial(
        _attention_seq_kernel, block_s=block_s, seq_len=S, ragged=ragged)

    # TODO(synk): on v7x with B == 1 only one of the two TensorCores is used;
    # splitting the sequence reduction across cores (per-core partial m/l/acc
    # combined at the end) would recover the idle core's bandwidth.
    return pl.pallas_call(
        kernel,
        out_shape=jax.ShapeDtypeStruct((B, H), dtype),
        grid_spec=pltpu.PrefetchScalarGridSpec(
            num_scalar_prefetch=0,
            grid=(B, num_s_tiles),
            in_specs=[
                # Batch dim squeezed: kernel sees a (block_s, H) tile directly.
                pl.BlockSpec((pl.Squeezed(), block_s, H),
                             lambda b, k: (b, k, 0)),
                # (1, H) lane-dense weight: same block every step -> resident.
                pl.BlockSpec((1, H), lambda b, k: (0, 0)),
            ],
            # Same output block across the S axis => accumulator-style output.
            out_specs=pl.BlockSpec((1, H), lambda b, k: (b, 0)),
            scratch_shapes=[
                pltpu.VMEM((1, 1), jnp.float32),   # running max
                pltpu.VMEM((1, 1), jnp.float32),   # running denominator
                pltpu.VMEM((1, H), jnp.float32),   # pooled accumulator
            ],
        ),
        compiler_params=pltpu.CompilerParams(
            dimension_semantics=("parallel", "arbitrary"),
            vmem_limit_bytes=vmem_limit),
        cost_estimate=cost,
    )(hidden_states, w_row)


def attention_reference(hidden_states, w, b):
    scores = jnp.einsum("bsh,ho->bso", hidden_states, w.reshape(-1, 1)) + b[0]
    weights = jax.nn.softmax(scores, axis=1)
    return jnp.sum(hidden_states * weights, axis=1)


if __name__ == "__main__":
    def make_inputs(key, B, S, H, dtype=jnp.float32):
        k_x, k_w, k_b = jax.random.split(key, 3)
        x = jax.random.normal(k_x, (B, S, H), dtype=dtype)
        # PyTorch-style Linear(H, 1) init: uniform(-1/sqrt(H), 1/sqrt(H)).
        bound = 1.0 / float(H) ** 0.5
        w = jax.random.uniform(k_w, (H, 1), dtype=jnp.float32,
                               minval=-bound, maxval=bound)
        b = jax.random.uniform(k_b, (1,), dtype=jnp.float32,
                               minval=-bound, maxval=bound)
        return x, w, b

    # 1) Small shapes implied by the module (single-pass, batch-packed path).
    x, w, b = make_inputs(jax.random.PRNGKey(0), B=2, S=8, H=32)
    out = jax.block_until_ready(attention_forward(x, w, b))
    ref = attention_reference(x, w, b)
    assert out.shape == (2, 32)
    assert jnp.allclose(out, ref, atol=1e-5, rtol=1e-5), "small-path mismatch"

    # 2) Exercise the tiled online-softmax path with a ragged last sequence
    #    tile by forcing a tiny tile budget at test-friendly shapes.
    x2, w2, b2 = make_inputs(jax.random.PRNGKey(1), B=2, S=44, H=128)
    out2 = jax.block_until_ready(
        attention_forward(x2, w2, b2, tile_budget_bytes=16 * 128 * 4))
    ref2 = attention_reference(x2, w2, b2)
    assert out2.shape == (2, 128)
    assert jnp.allclose(out2, ref2, atol=1e-5, rtol=1e-5), "seq-path mismatch"

    print("KERNEL_OK")
</pallas_src>

<mosaic_0001>
module attributes {stable_mosaic.version = 11 : i64} {
  func.func @_attention_small_kernel(%arg0: i32, %arg1: memref<2x8x32xf32, #tpu.memory_space<vmem>>, %arg2: memref<1x32xf32, #tpu.memory_space<vmem>>, %arg3: memref<2x32xf32, #tpu.memory_space<vmem>>) attributes {dimension_semantics = [#tpu.dimension_semantics<parallel>], iteration_bounds = array<i64: 1>, scalar_prefetch = 0 : i64, scratch_operands = 0 : i64, tpu.core_type = #tpu.core_type<tc>, window_params = [{transform_indices = @transform_0, window_bounds = array<i64: 2, 8, 32>}, {pipeline_mode = #tpu.pipeline_mode<synchronous>, transform_indices = @transform_1, window_bounds = array<i64: 1, 32>}, {transform_indices = @transform_2, window_bounds = array<i64: 2, 32>}]} {
    %c0 = arith.constant 0 : index
    %c0_0 = arith.constant 0 : index
    %c0_1 = arith.constant 0 : index
    %0 = vector.load %arg1[%c0, %c0_0, %c0_1] : memref<2x8x32xf32, #tpu.memory_space<vmem>>, vector<2x8x32xf32>
    %c0_2 = arith.constant 0 : index
    %c0_3 = arith.constant 0 : index
    %1 = vector.load %arg2[%c0_2, %c0_3] : memref<1x32xf32, #tpu.memory_space<vmem>>, vector<1x32xf32>
    %2 = vector.shape_cast %1 : vector<1x32xf32> to vector<1x1x32xf32>
    %3 = vector.broadcast %2 : vector<1x1x32xf32> to vector<2x8x32xf32>
    %4 = arith.mulf %0, %3 : vector<2x8x32xf32>
    %cst = arith.constant dense<0.000000e+00> : vector<2x8xf32>
    %5 = vector.multi_reduction <add>, %4, %cst [2] : vector<2x8x32xf32> to vector<2x8xf32>
    %6 = vector.shape_cast %5 : vector<2x8xf32> to vector<2x8x1xf32>
    %cst_4 = arith.constant dense<0xFF800000> : vector<2x1xf32>
    %7 = vector.multi_reduction <maximumf>, %6, %cst_4 [1] : vector<2x8x1xf32> to vector<2x1xf32>
    %8 = vector.shape_cast %7 : vector<2x1xf32> to vector<2x1x1xf32>
    %9 = vector.broadcast %8 : vector<2x1x1xf32> to vector<2x8x1xf32>
    %10 = arith.subf %6, %9 : vector<2x8x1xf32>
    %11 = math.exp %10 : vector<2x8x1xf32>
    %cst_5 = arith.constant dense<0.000000e+00> : vector<2x1xf32>
    %12 = vector.multi_reduction <add>, %11, %cst_5 [1] : vector<2x8x1xf32> to vector<2x1xf32>
    %13 = vector.shape_cast %12 : vector<2x1xf32> to vector<2x1x1xf32>
    %14 = vector.broadcast %13 : vector<2x1x1xf32> to vector<2x8x1xf32>
    %15 = arith.divf %11, %14 : vector<2x8x1xf32>
    %16 = vector.broadcast %15 : vector<2x8x1xf32> to vector<2x8x32xf32>
    %17 = arith.mulf %0, %16 : vector<2x8x32xf32>
    %cst_6 = arith.constant dense<0.000000e+00> : vector<2x32xf32>
    %18 = vector.multi_reduction <add>, %17, %cst_6 [1] : vector<2x8x32xf32> to vector<2x32xf32>
    %c0_7 = arith.constant 0 : index
    %c0_8 = arith.constant 0 : index
    %19 = vector.load %arg3[%c0_7, %c0_8] : memref<2x32xf32, #tpu.memory_space<vmem>>, vector<2x32xf32>
    tpu.vector_store %arg3[%c0_7, %c0_8], %18 {strides = array<i32>} : memref<2x32xf32, #tpu.memory_space<vmem>>, vector<2x32xf32>,
    return
  }
  func.func @transform_0(%arg0: i32) -> (i32, i32, i32) {
    %c0_i32 = arith.constant 0 : i32
    %c0_i32_0 = arith.constant 0 : i32
    %c0_i32_1 = arith.constant 0 : i32
    return %arg0, %c0_i32, %c0_i32_0 : i32, i32, i32
  }
  func.func @transform_1(%arg0: i32) -> (i32, i32) {
    %c0_i32 = arith.constant 0 : i32
    %c0_i32_0 = arith.constant 0 : i32
    %c0_i32_1 = arith.constant 0 : i32
    return %c0_i32, %c0_i32_0 : i32, i32
  }
  func.func @transform_2(%arg0: i32) -> (i32, i32) {
    %c0_i32 = arith.constant 0 : i32
    %c0_i32_0 = arith.constant 0 : i32
    return %arg0, %c0_i32 : i32, i32
  }
}

</mosaic_0001>

<llo_original>
// kernel: tpu_custom_call.1
$region0: #{tpu_custom_call.1}
  #allocation0 [shape = 'u32[]', space=smem, size = 0x4, offset = 0x4, fixed_abs, tag = 'smem constant byte address 0x4 - core index']
  #allocation1 [shape = 'u32[72,128]{1,0:T(1,128)}', space=vmem, size = 0x9000, scoped, tag = 'internal scratch']
  %s0 = inlined_call_operand.hbm [shape: f32[2,8,32], index: 0, kind: input, shape index: {}]
  %s1 = inlined_call_operand.hbm [shape: f32[1,32], index: 1, kind: input, shape index: {}]
  %s2 = inlined_call_operand.hbm [shape: f32[2,32], index: 2, kind: output, shape index: {}]
  %s3 = sld [smem:[#allocation0]]
  $region26: #{tpu_custom_call.1} parent=0
    _
  %s5 = ssub.s32 1, %s3
  %s6 = scalar_select 0, %s5, %s3
  $region1: #{tpu_custom_call.1} parent=0
    #allocation2 [shape = 'u8[8192]{0}', space=vmem, size = 0x2000, scoped, tag = 'input window, operand 0, single buffered']
    #allocation3 [shape = 's32[1]{0}', space=sflag, size = 0x4, scoped, tag = 'scoped memory for tpu_custom_call.1']
    #allocation4 [shape = 's32[1]{0}', space=sflag, size = 0x4, scoped, tag = 'scoped memory for tpu_custom_call.1']
    #allocation5 [shape = 'u8[512]{0}', space=vmem, size = 0x400, scoped, tag = 'input window, operand 1, single buffered']
    #allocation6 [shape = 's32[1]{0}', space=sflag, size = 0x4, scoped, tag = 'scoped memory for tpu_custom_call.1']
    #allocation7 [shape = 'u8[1024]{0}', space=vmem, size = 0x400, scoped, tag = 'output window, operand 0, single buffered']
    %7 = vsyncpa [#allocation3], 0
    %8 = vsyncpa [#allocation6], 0
    %9 = vsyncpa [#allocation4], 0
    // Predicated region
    $region2: #{tpu_custom_call.1} parent=1 // pred_check
      _
    $region3: #{tpu_custom_call.1} parent=1 // pred_check_branch
      %11 = sbr.rel (0) target = $region5
    $region4: #{tpu_custom_call.1} parent=1 // pred_region
      %13 = vsyncadd [#allocation3], 0
      %s14 = sshll.u32 %s0, 4
      %s15 = int_to_ptr.hbm [resolvable:$true] %s14
      %s16 = sshll.u32 [#allocation2], 4
      %s17 = int_to_ptr.vmem [resolvable:$true] %s16
      %22 = dma.hbm_to_vmem [thread:$0]  %s15, 256, %s17, [#allocation3], 128, 128, 8
    $region5: #{tpu_custom_call.1} parent=1 // pred_fallthru
      _
    // Predicated region
    $region6: #{tpu_custom_call.1} parent=1 // pred_check
      _
    $region7: #{tpu_custom_call.1} parent=1 // pred_check_branch
      %24 = sbr.rel (0) target = $region9
    $region8: #{tpu_custom_call.1} parent=1 // pred_region
      %26 = vsyncadd [#allocation6], 0
      %s28 = sshll.u32 %s1, 4
      %s29 = int_to_ptr.hbm [resolvable:$true] %s28
      %s30 = sshll.u32 [#allocation5], 4
      %s31 = int_to_ptr.vmem [resolvable:$true] %s30
      %33 = dma.hbm_to_vmem [thread:$0]  %s29, 16, %s31, [#allocation6]
    $region9: #{tpu_custom_call.1} parent=1 // pred_fallthru
      _
    // Predicated region
    $region10: #{tpu_custom_call.1} parent=1 // pred_check
      _
    $region11: #{tpu_custom_call.1} parent=1 // pred_check_branch
      %35 = sbr.rel (0) target = $region13
    $region12: #{tpu_custom_call.1} parent=1 // pred_region
      %37 = dma.done [#allocation3], 256
    $region13: #{tpu_custom_call.1} parent=1 // pred_fallthru
      _
    // Predicated region
    $region14: #{tpu_custom_call.1} parent=1 // pred_check
      _
    $region15: #{tpu_custom_call.1} parent=1 // pred_check_branch
      %39 = sbr.rel (0) target = $region17
    $region16: #{tpu_custom_call.1} parent=1 // pred_region
      %41 = dma.done [#allocation6], 16
    $region17: #{tpu_custom_call.1} parent=1 // pred_fallthru
      _
    %v42 = vld [vmem:[#allocation2] sm:$0xff]
    %v43 = vld [vmem:[#allocation2 + $0x8] sm:$0xff]
    %v44 = vld [vmem:[#allocation5] sm:$0x1]
    %v46 = vperm.slane %v44, 0
    %v48 = vmul.f32 %v42, %v46
    %v49 = vmul.f32 %v43, %v46
    %vm50 = vcmask 261120
    %v51 = vsel %vm50, %v48, 0.0
    %52 = vadd.xlane.f32.xlu0 %v51
    %v53 = vpop.xlane.xlu0 %52
    %v54 = vsel %vm50, %v49, 0.0
    %55 = vadd.xlane.f32.xlu0 %v54
    %v56 = vpop.xlane.xlu0 %55
    %v57 = vrot.slane %v53, 4
    %v58 = vmax.f32 %v53, %v57
    %v59 = vrot.slane %v58, 2
    %v60 = vmax.f32 %v58, %v59
    %v61 = vrot.slane %v60, 1
    %v62 = vmax.f32 %v60, %v61
    %v63 = vrot.slane %v56, 4
    %v64 = vmax.f32 %v56, %v63
    %v65 = vrot.slane %v64, 2
    %v66 = vmax.f32 %v64, %v65
    %v67 = vrot.slane %v66, 1
    %v68 = vmax.f32 %v66, %v67
    %v69 = vsub.f32 %v53, %v62
    %v70 = vsub.f32 %v56, %v68
    %v71 = vmul.f32 %v69, 1.442695
    %v72 = vpow.pop %v71
    %v73 = vmul.f32 %v70, 1.442695
    %v74 = vpow.pop %v73
    %v75 = vrot.slane %v72, 4
    %v76 = vadd.f32 %v72, %v75
    %v77 = vrot.slane %v76, 2
    %v78 = vadd.f32 %v76, %v77
    %v79 = vrot.slane %v78, 1
    %v80 = vadd.f32 %v78, %v79
    %v81 = vrot.slane %v74, 4
    %v82 = vadd.f32 %v74, %v81
    %v83 = vrot.slane %v82, 2
    %v84 = vadd.f32 %v82, %v83
    %v85 = vrot.slane %v84, 1
    %v86 = vadd.f32 %v84, %v85
    %v87 = vrcp.pop %v80
    %v88 = vmul.f32 %v80, %v87
    %v89 = vsub.f32 1.0, %v88
    %v90 = vmul.f32 %v87, %v89
    %v91 = vadd.f32 %v87, %v90
    %vm92 = vweird.f32 %v80
    %vm93 = vweird.f32 %v87
    %vm94 = vmor %vm92, %vm93
    %v95 = vsel %vm94, %v87, %v91
    %v96 = vand.u32 2147483647, %v80
    %vm97 = vcmp.eq.f32.partialorder %v96, 8.507059e+37
    %v98 = vand.u32 %v80, 2147483648
    %v99 = vor.u32 1.1754944e-38, %v98
    %v100 = vsel %vm97, %v99, %v95
    %v101 = vmul.f32 %v72, %v100
    %v102 = vrcp.pop %v86
    %v103 = vmul.f32 %v86, %v102
    %v104 = vsub.f32 1.0, %v103
    %v105 = vmul.f32 %v102, %v104
    %v106 = vadd.f32 %v102, %v105
    %vm107 = vweird.f32 %v86
    %vm108 = vweird.f32 %v102
    %vm109 = vmor %vm107, %vm108
    %v110 = vsel %vm109, %v102, %v106
    %v111 = vand.u32 2147483647, %v86
    %vm112 = vcmp.eq.f32.partialorder %v111, 8.507059e+37
    %v113 = vand.u32 %v86, 2147483648
    %v114 = vor.u32 1.1754944e-38, %v113
    %v115 = vsel %vm112, %v114, %v110
    %v116 = vmul.f32 %v74, %v115
    %v117 = vmul.f32 %v42, %v101
    %v118 = vmul.f32 %v43, %v116
    %v119 = vsel %vm50, %v117, 0.0
    %v120 = vrot.slane %v119, 4
    %v121 = vadd.f32 %v119, %v120
    %v122 = vrot.slane %v121, 2
    %v123 = vadd.f32 %v121, %v122
    %v124 = vrot.slane %v123, 1
    %v125 = vadd.f32 %v123, %v124
    %v126 = vsel %vm50, %v118, 0.0
    %v127 = vrot.slane %v126, 4
    %v128 = vadd.f32 %v126, %v127
    %v129 = vrot.slane %v128, 2
    %v130 = vadd.f32 %v128, %v129
    %v131 = vrot.slane %v130, 1
    %v132 = vadd.f32 %v130, %v131
    %vm135 = vcmask 1041409
    %v136 = vsel %vm135, %v132, %v125
    %vm138 = vcmask 254976
    %139 = vst.msk [vmem:[#allocation7] sm:$0x3] %vm138, %v136
    // Predicated region
    $region18: #{tpu_custom_call.1} parent=1 // pred_check
      _
    $region19: #{tpu_custom_call.1} parent=1 // pred_check_branch
      %141 = sbr.rel (0) target = $region21
    $region20: #{tpu_custom_call.1} parent=1 // pred_region
      %143 = vsyncadd [#allocation4], 0
      %s145 = sshll.u32 [#allocation7], 4
      %s146 = int_to_ptr.vmem [resolvable:$true] %s145
      %s147 = sshll.u32 %s2, 4
      %s148 = int_to_ptr.hbm [resolvable:$true] %s147
      %150 = dma.vmem_to_hbm [thread:$0]  %s146, 32, %s148, [#allocation4]
    $region21: #{tpu_custom_call.1} parent=1 // pred_fallthru
      _
    // Predicated region
    $region22: #{tpu_custom_call.1} parent=1 // pred_check
      _
    $region23: #{tpu_custom_call.1} parent=1 // pred_check_branch
      %152 = sbr.rel (0) target = $region25
    $region24: #{tpu_custom_call.1} parent=1 // pred_region
      %154 = dma.done [#allocation4], 32
    $region25: #{tpu_custom_call.1} parent=1 // pred_fallthru
      _
    %155 = vsyncpa [#allocation3], 1
    %156 = vsyncpa [#allocation6], 1
    %157 = vsyncpa [#allocation4], 1

</llo_original>
